<compile_context>
chip_gen: v7x
topology: tpu7x:2x2x1
jax: 0.10.0
libtpu: 0.0.40
codegen_flags: <defaults>
</compile_context>

<pallas_src>
import jax
import jax.numpy as jnp
from jax.experimental import pallas as pl
from jax.experimental.pallas import tpu as pltpu


def model_forward(x_nchw, weight_oihw, bias, padding0_nchw, *, stride=15):
    N, Cin, H, W = x_nchw.shape
    Cout, Cin_w, KH, KW = weight_oihw.shape
    assert Cin_w == Cin
    OH = (H - KH) // stride + 1
    OW = (W - KW) // stride + 1
    M = N * OH * OW
    K = KH * KW * Cin
    Kpad = ((K + 127) // 128) * 128          # lane-align the contraction dim

    # The disjoint-window im2col below requires kernel_size <= stride.
    assert KH <= stride and KW <= stride, "layout assumes kernel_size <= stride"

    Hc, Wc = OH * stride, OW * stride        # crop/pad target so H,W split as (O*, stride)

    # ---------- wrapper glue (crop first, then one relayout fusion) ----------
    xf = x_nchw.astype(jnp.float32)
    pad_h, pad_w = max(0, Hc - H), max(0, Wc - W)
    if pad_h or pad_w:
        # Padded rows/cols land at kh >= KH / kw >= KW and are sliced away below.
        xf = jnp.pad(xf, ((0, 0), (0, 0), (0, pad_h), (0, pad_w)))
    xf = xf[:, :, :Hc, :Wc]                                  # (N, Cin, Hc, Wc)

    # NCHW -> NHWC on the cropped window, then keep only the KHxKW sub-window
    # of each disjoint stride x stride cell.
    xt = jnp.transpose(xf, (0, 2, 3, 1))                     # (N, Hc, Wc, Cin)
    x6 = xt.reshape(N, OH, stride, OW, stride, Cin)[:, :, :KH, :, :KW, :]
    # (N, OH, KH, OW, KW, Cin) -> im2col rows (M, K); K ordered (kh, kw, ci).
    x_im = jnp.transpose(x6, (0, 1, 3, 2, 4, 5)).reshape(M, K)
    x_im = jnp.pad(x_im, ((0, 0), (0, Kpad - K)))            # (M, Kpad)

    # Weight (Cout, Cin, KH, KW) -> (K, Cout) with matching (kh, kw, ci) order,
    # zero-padded rows contribute nothing to the dot.
    w2 = jnp.transpose(weight_oihw, (2, 3, 1, 0)).reshape(K, Cout).astype(jnp.float32)
    w2 = jnp.pad(w2, ((0, Kpad - K), (0, 0)))                # (Kpad, Cout)

    # Residual + bias in GEMM-output layout; seeds the accumulator and is
    # aliased onto the output buffer.
    pb = (jnp.transpose(padding0_nchw, (0, 2, 3, 1)).reshape(M, Cout)
          + bias.reshape(1, Cout)).astype(jnp.float32)       # (M, Cout)

    # ---------- fused GEMM + residual-add kernel (single block) ----------
    def kernel(x_ref, w_ref, pb_ref, o_ref):
        # x_ref : (M, Kpad)     VMEM
        # w_ref : (Kpad, Cout)  VMEM
        # pb_ref: (M, Cout)     VMEM (padding0 + bias; aliased to output)
        # o_ref : (M, Cout)     VMEM
        o_ref[...] = pb_ref[...] + jnp.dot(
            x_ref[...], w_ref[...], preferred_element_type=jnp.float32)

    out_mat = pl.pallas_call(
        kernel,
        out_shape=jax.ShapeDtypeStruct((M, Cout), jnp.float32),
        in_specs=[
            pl.BlockSpec(memory_space=pltpu.MemorySpace.VMEM),
            pl.BlockSpec(memory_space=pltpu.MemorySpace.VMEM),
            pl.BlockSpec(memory_space=pltpu.MemorySpace.VMEM),
        ],
        out_specs=pl.BlockSpec(memory_space=pltpu.MemorySpace.VMEM),
        input_output_aliases={2: 0},          # pb buffer reused as output
        cost_estimate=pl.CostEstimate(
            flops=2 * M * Kpad * Cout + M * Cout,
            transcendentals=0,
            bytes_accessed=4 * (M * Kpad + Kpad * Cout + 2 * M * Cout),
        ),
    )(x_im, w2, pb)

    # ---------- back to NCHW ----------
    out = out_mat.reshape(N, OH, OW, Cout)
    return jnp.transpose(out, (0, 3, 1, 2))


if __name__ == "__main__":
    # Small shapes consistent with Conv2d(32, 32, 7, stride=15).
    N, Cin, Cout, H, W, KH, KW, STRIDE = 1, 32, 32, 64, 64, 7, 7, 15
    OH = (H - KH) // STRIDE + 1
    OW = (W - KW) // STRIDE + 1

    key = jax.random.PRNGKey(0)
    kx, kwt, kb, kp = jax.random.split(key, 4)

    x = jax.random.normal(kx, (N, Cin, H, W), dtype=jnp.float32)
    fan_in = Cin * KH * KW
    weight = jax.random.normal(kwt, (Cout, Cin, KH, KW), dtype=jnp.float32) / jnp.sqrt(fan_in)
    bias = jax.random.normal(kb, (Cout,), dtype=jnp.float32) * 0.01
    # In the PyTorch module padding0 defaults to torch.randn(v1.shape); generated
    # deterministically here and passed explicitly.
    padding0 = jax.random.normal(kp, (N, Cout, OH, OW), dtype=jnp.float32)

    fwd = jax.jit(model_forward, static_argnames=("stride",))
    out = fwd(x, weight, bias, padding0, stride=STRIDE)
    out = jax.block_until_ready(out)

    # Sanity check against XLA's native conv.
    ref = jax.lax.conv_general_dilated(
        x, weight, window_strides=(STRIDE, STRIDE), padding="VALID",
        dimension_numbers=("NCHW", "OIHW", "NCHW"),
        precision=jax.lax.Precision.HIGHEST,
    ) + bias[None, :, None, None] + padding0

    assert out.shape == (N, Cout, OH, OW)
    assert jnp.allclose(out, ref, atol=1e-3, rtol=1e-3), "mismatch vs reference conv"

    print("KERNEL_OK")
</pallas_src>

<mosaic_0001>
module attributes {stable_mosaic.version = 11 : i64} {
  func.func @kernel(%arg0: memref<16x1664xf32, #tpu.memory_space<vmem>>, %arg1: memref<1664x32xf32, #tpu.memory_space<vmem>>, %arg2: memref<16x32xf32, #tpu.memory_space<vmem>>, %arg3: memref<16x32xf32, #tpu.memory_space<vmem>>) attributes {dimension_semantics = [], scalar_prefetch = 0 : i64, scratch_operands = 0 : i64, tpu.core_type = #tpu.core_type<tc>} {
    %c0 = arith.constant 0 : index
    %c0_0 = arith.constant 0 : index
    %0 = vector.load %arg2[%c0, %c0_0] : memref<16x32xf32, #tpu.memory_space<vmem>>, vector<16x32xf32>
    %c0_1 = arith.constant 0 : index
    %c0_2 = arith.constant 0 : index
    %1 = vector.load %arg0[%c0_1, %c0_2] : memref<16x1664xf32, #tpu.memory_space<vmem>>, vector<16x1664xf32>
    %c0_3 = arith.constant 0 : index
    %c0_4 = arith.constant 0 : index
    %2 = vector.load %arg1[%c0_3, %c0_4] : memref<1664x32xf32, #tpu.memory_space<vmem>>, vector<1664x32xf32>
    %cst = arith.constant dense<0.000000e+00> : vector<16x32xf32>
    %3 = tpu.matmul %1, %2, %cst {dimension_numbers = #tpu.dot_dimension_numbers<[1], [0], [0], [1], [0, 0, 1, 1], [], []>} : vector<16x1664xf32>, vector<1664x32xf32>, vector<16x32xf32> -> vector<16x32xf32>
    %4 = arith.addf %0, %3 : vector<16x32xf32>
    %c0_5 = arith.constant 0 : index
    %c0_6 = arith.constant 0 : index
    %5 = vector.load %arg3[%c0_5, %c0_6] : memref<16x32xf32, #tpu.memory_space<vmem>>, vector<16x32xf32>
    tpu.vector_store %arg3[%c0_5, %c0_6], %4 {strides = array<i32>} : memref<16x32xf32, #tpu.memory_space<vmem>>, vector<16x32xf32>,
    return
  }
}

</mosaic_0001>

<llo_original>
// kernel: model_forward.1
$region0: #{model_forward.1}
  #allocation0 [shape = 'u32[]', space=smem, size = 0x4, offset = 0x4, fixed_abs, tag = 'smem constant byte address 0x4 - core index']
  #allocation1 [shape = 'u32[144,128]{1,0:T(1,128)}', space=vmem, size = 0x12000, scoped, tag = 'internal scratch']
  %s0 = inlined_call_operand.vmem [shape: f32[16,1664], index: 0, kind: input, shape index: {}]
  %s1 = inlined_call_operand.vmem [shape: f32[1664,32], index: 1, kind: input, shape index: {}]
  %s2 = inlined_call_operand.vmem [shape: f32[16,32], index: 2, kind: input, shape index: {}, may-alias: {2,3}]
  %s3 = inlined_call_operand.vmem [shape: f32[16,32], index: 3, kind: output, shape index: {}, may-alias: {2,3}]
  %s4 = sld [smem:[#allocation0]]
  $region22: #{model_forward.1} parent=0
    _
  %s6 = ssub.s32 1, %s4
  %s7 = scalar_select 0, %s6, %s4
  // Predicated region
  $region2: #{model_forward.1} parent=0 // pred_check
    _
  $region3: #{model_forward.1} parent=0 // pred_check_branch
    %9 = sbr.rel (0) target = $region5
  $region4: #{model_forward.1} parent=0 // pred_region
    _
  $region5: #{model_forward.1} parent=0 // pred_fallthru
    _
  // Predicated region
  $region6: #{model_forward.1} parent=0 // pred_check
    _
  $region7: #{model_forward.1} parent=0 // pred_check_branch
    %11 = sbr.rel (0) target = $region9
  $region8: #{model_forward.1} parent=0 // pred_region
    _
  $region9: #{model_forward.1} parent=0 // pred_fallthru
    _
  // Predicated region
  $region10: #{model_forward.1} parent=0 // pred_check
    _
  $region11: #{model_forward.1} parent=0 // pred_check_branch
    %13 = sbr.rel (0) target = $region13
  $region12: #{model_forward.1} parent=0 // pred_region
    _
  $region13: #{model_forward.1} parent=0 // pred_fallthru
    _
  %v14 = vld [vmem:[%s2] sm:$0xff]
  %v15 = vld [vmem:[%s2 + $0x8] sm:$0xff]
  %v16 = vld [vmem:[%s0] sm:$0xff]
  %v17 = vld [vmem:[%s0 + $0x8] sm:$0xff]
  %v18 = vld [vmem:[%s0 + $0x10] sm:$0xff]
  %v19 = vld [vmem:[%s0 + $0x18] sm:$0xff]
  %v20 = vld [vmem:[%s0 + $0x20] sm:$0xff]
  %v21 = vld [vmem:[%s0 + $0x28] sm:$0xff]
  %v22 = vld [vmem:[%s0 + $0x30] sm:$0xff]
  %v23 = vld [vmem:[%s0 + $0x38] sm:$0xff]
  %v24 = vld [vmem:[%s0 + $0x40] sm:$0xff]
  %v25 = vld [vmem:[%s0 + $0x48] sm:$0xff]
  %v26 = vld [vmem:[%s0 + $0x50] sm:$0xff]
  %v27 = vld [vmem:[%s0 + $0x58] sm:$0xff]
  %v28 = vld [vmem:[%s0 + $0x60] sm:$0xff]
  %v29 = vld [vmem:[%s0 + $0x68] sm:$0xff]
  %v30 = vld [vmem:[%s0 + $0x70] sm:$0xff]
  %v31 = vld [vmem:[%s0 + $0x78] sm:$0xff]
  %v32 = vld [vmem:[%s0 + $0x80] sm:$0xff]
  %v33 = vld [vmem:[%s0 + $0x88] sm:$0xff]
  %v34 = vld [vmem:[%s0 + $0x90] sm:$0xff]
  %v35 = vld [vmem:[%s0 + $0x98] sm:$0xff]
  %v36 = vld [vmem:[%s0 + $0xa0] sm:$0xff]
  %v37 = vld [vmem:[%s0 + $0xa8] sm:$0xff]
  %v38 = vld [vmem:[%s0 + $0xb0] sm:$0xff]
  %v39 = vld [vmem:[%s0 + $0xb8] sm:$0xff]
  %v40 = vld [vmem:[%s0 + $0xc0] sm:$0xff]
  %v41 = vld [vmem:[%s0 + $0xc8] sm:$0xff]
  %v42 = vld [vmem:[%s1] sm:$0xff]
  %v43 = vld [vmem:[%s1 + $0x8] sm:$0xff]
  %v44 = vld [vmem:[%s1 + $0x10] sm:$0xff]
  %v45 = vld [vmem:[%s1 + $0x18] sm:$0xff]
  %v46 = vld [vmem:[%s1 + $0x20] sm:$0xff]
  %v47 = vld [vmem:[%s1 + $0x28] sm:$0xff]
  %v48 = vld [vmem:[%s1 + $0x30] sm:$0xff]
  %v49 = vld [vmem:[%s1 + $0x38] sm:$0xff]
  %v50 = vld [vmem:[%s1 + $0x40] sm:$0xff]
  %v51 = vld [vmem:[%s1 + $0x48] sm:$0xff]
  %v52 = vld [vmem:[%s1 + $0x50] sm:$0xff]
  %v53 = vld [vmem:[%s1 + $0x58] sm:$0xff]
  %v54 = vld [vmem:[%s1 + $0x60] sm:$0xff]
  %v55 = vld [vmem:[%s1 + $0x68] sm:$0xff]
  %v56 = vld [vmem:[%s1 + $0x70] sm:$0xff]
  %v57 = vld [vmem:[%s1 + $0x78] sm:$0xff]
  %v58 = vld [vmem:[%s1 + $0x80] sm:$0xff]
  %v59 = vld [vmem:[%s1 + $0x88] sm:$0xff]
  %v60 = vld [vmem:[%s1 + $0x90] sm:$0xff]
  %v61 = vld [vmem:[%s1 + $0x98] sm:$0xff]
  %v62 = vld [vmem:[%s1 + $0xa0] sm:$0xff]
  %v63 = vld [vmem:[%s1 + $0xa8] sm:$0xff]
  %v64 = vld [vmem:[%s1 + $0xb0] sm:$0xff]
  %v65 = vld [vmem:[%s1 + $0xb8] sm:$0xff]
  %v66 = vld [vmem:[%s1 + $0xc0] sm:$0xff]
  %v67 = vld [vmem:[%s1 + $0xc8] sm:$0xff]
  %v68 = vld [vmem:[%s1 + $0xd0] sm:$0xff]
  %v69 = vld [vmem:[%s1 + $0xd8] sm:$0xff]
  %v70 = vld [vmem:[%s1 + $0xe0] sm:$0xff]
  %v71 = vld [vmem:[%s1 + $0xe8] sm:$0xff]
  %v72 = vld [vmem:[%s1 + $0xf0] sm:$0xff]
  %v73 = vld [vmem:[%s1 + $0xf8] sm:$0xff]
  %v74 = vld [vmem:[%s1 + $0x100] sm:$0xff]
  %v75 = vld [vmem:[%s1 + $0x108] sm:$0xff]
  %v76 = vld [vmem:[%s1 + $0x110] sm:$0xff]
  %v77 = vld [vmem:[%s1 + $0x118] sm:$0xff]
  %v78 = vld [vmem:[%s1 + $0x120] sm:$0xff]
  %v79 = vld [vmem:[%s1 + $0x128] sm:$0xff]
  %v80 = vld [vmem:[%s1 + $0x130] sm:$0xff]
  %v81 = vld [vmem:[%s1 + $0x138] sm:$0xff]
  %v82 = vld [vmem:[%s1 + $0x140] sm:$0xff]
  %v83 = vld [vmem:[%s1 + $0x148] sm:$0xff]
  %v84 = vld [vmem:[%s1 + $0x150] sm:$0xff]
  %v85 = vld [vmem:[%s1 + $0x158] sm:$0xff]
  %v86 = vld [vmem:[%s1 + $0x160] sm:$0xff]
  %v87 = vld [vmem:[%s1 + $0x168] sm:$0xff]
  %v88 = vld [vmem:[%s1 + $0x170] sm:$0xff]
  %v89 = vld [vmem:[%s1 + $0x178] sm:$0xff]
  %v90 = vld [vmem:[%s1 + $0x180] sm:$0xff]
  %v91 = vld [vmem:[%s1 + $0x188] sm:$0xff]
  %v92 = vld [vmem:[%s1 + $0x190] sm:$0xff]
  %v93 = vld [vmem:[%s1 + $0x198] sm:$0xff]
  %v94 = vld [vmem:[%s1 + $0x1a0] sm:$0xff]
  %v95 = vld [vmem:[%s1 + $0x1a8] sm:$0xff]
  %v96 = vld [vmem:[%s1 + $0x1b0] sm:$0xff]
  %v97 = vld [vmem:[%s1 + $0x1b8] sm:$0xff]
  %v98 = vld [vmem:[%s1 + $0x1c0] sm:$0xff]
  %v99 = vld [vmem:[%s1 + $0x1c8] sm:$0xff]
  %v100 = vld [vmem:[%s1 + $0x1d0] sm:$0xff]
  %v101 = vld [vmem:[%s1 + $0x1d8] sm:$0xff]
  %v102 = vld [vmem:[%s1 + $0x1e0] sm:$0xff]
  %v103 = vld [vmem:[%s1 + $0x1e8] sm:$0xff]
  %v104 = vld [vmem:[%s1 + $0x1f0] sm:$0xff]
  %v105 = vld [vmem:[%s1 + $0x1f8] sm:$0xff]
  %v106 = vld [vmem:[%s1 + $0x200] sm:$0xff]
  %v107 = vld [vmem:[%s1 + $0x208] sm:$0xff]
  %v108 = vld [vmem:[%s1 + $0x210] sm:$0xff]
  %v109 = vld [vmem:[%s1 + $0x218] sm:$0xff]
  %v110 = vld [vmem:[%s1 + $0x220] sm:$0xff]
  %v111 = vld [vmem:[%s1 + $0x228] sm:$0xff]
  %v112 = vld [vmem:[%s1 + $0x230] sm:$0xff]
  %v113 = vld [vmem:[%s1 + $0x238] sm:$0xff]
  %v114 = vld [vmem:[%s1 + $0x240] sm:$0xff]
  %v115 = vld [vmem:[%s1 + $0x248] sm:$0xff]
  %v116 = vld [vmem:[%s1 + $0x250] sm:$0xff]
  %v117 = vld [vmem:[%s1 + $0x258] sm:$0xff]
  %v118 = vld [vmem:[%s1 + $0x260] sm:$0xff]
  %v119 = vld [vmem:[%s1 + $0x268] sm:$0xff]
  %v120 = vld [vmem:[%s1 + $0x270] sm:$0xff]
  %v121 = vld [vmem:[%s1 + $0x278] sm:$0xff]
  %v122 = vld [vmem:[%s1 + $0x280] sm:$0xff]
  %v123 = vld [vmem:[%s1 + $0x288] sm:$0xff]
  %v124 = vld [vmem:[%s1 + $0x290] sm:$0xff]
  %v125 = vld [vmem:[%s1 + $0x298] sm:$0xff]
  %v126 = vld [vmem:[%s1 + $0x2a0] sm:$0xff]
  %v127 = vld [vmem:[%s1 + $0x2a8] sm:$0xff]
  %v128 = vld [vmem:[%s1 + $0x2b0] sm:$0xff]
  %v129 = vld [vmem:[%s1 + $0x2b8] sm:$0xff]
  %v130 = vld [vmem:[%s1 + $0x2c0] sm:$0xff]
  %v131 = vld [vmem:[%s1 + $0x2c8] sm:$0xff]
  %v132 = vld [vmem:[%s1 + $0x2d0] sm:$0xff]
  %v133 = vld [vmem:[%s1 + $0x2d8] sm:$0xff]
  %v134 = vld [vmem:[%s1 + $0x2e0] sm:$0xff]
  %v135 = vld [vmem:[%s1 + $0x2e8] sm:$0xff]
  %v136 = vld [vmem:[%s1 + $0x2f0] sm:$0xff]
  %v137 = vld [vmem:[%s1 + $0x2f8] sm:$0xff]
  %v138 = vld [vmem:[%s1 + $0x300] sm:$0xff]
  %v139 = vld [vmem:[%s1 + $0x308] sm:$0xff]
  %v140 = vld [vmem:[%s1 + $0x310] sm:$0xff]
  %v141 = vld [vmem:[%s1 + $0x318] sm:$0xff]
  %v142 = vld [vmem:[%s1 + $0x320] sm:$0xff]
  %v143 = vld [vmem:[%s1 + $0x328] sm:$0xff]
  %v144 = vld [vmem:[%s1 + $0x330] sm:$0xff]
  %v145 = vld [vmem:[%s1 + $0x338] sm:$0xff]
  %v146 = vld [vmem:[%s1 + $0x340] sm:$0xff]
  %v147 = vld [vmem:[%s1 + $0x348] sm:$0xff]
  %v148 = vld [vmem:[%s1 + $0x350] sm:$0xff]
  %v149 = vld [vmem:[%s1 + $0x358] sm:$0xff]
  %v150 = vld [vmem:[%s1 + $0x360] sm:$0xff]
  %v151 = vld [vmem:[%s1 + $0x368] sm:$0xff]
  %v152 = vld [vmem:[%s1 + $0x370] sm:$0xff]
  %v153 = vld [vmem:[%s1 + $0x378] sm:$0xff]
  %v154 = vld [vmem:[%s1 + $0x380] sm:$0xff]
  %v155 = vld [vmem:[%s1 + $0x388] sm:$0xff]
  %v156 = vld [vmem:[%s1 + $0x390] sm:$0xff]
  %v157 = vld [vmem:[%s1 + $0x398] sm:$0xff]
  %v158 = vld [vmem:[%s1 + $0x3a0] sm:$0xff]
  %v159 = vld [vmem:[%s1 + $0x3a8] sm:$0xff]
  %v160 = vld [vmem:[%s1 + $0x3b0] sm:$0xff]
  %v161 = vld [vmem:[%s1 + $0x3b8] sm:$0xff]
  %v162 = vld [vmem:[%s1 + $0x3c0] sm:$0xff]
  %v163 = vld [vmem:[%s1 + $0x3c8] sm:$0xff]
  %v164 = vld [vmem:[%s1 + $0x3d0] sm:$0xff]
  %v165 = vld [vmem:[%s1 + $0x3d8] sm:$0xff]
  %v166 = vld [vmem:[%s1 + $0x3e0] sm:$0xff]
  %v167 = vld [vmem:[%s1 + $0x3e8] sm:$0xff]
  %v168 = vld [vmem:[%s1 + $0x3f0] sm:$0xff]
  %v169 = vld [vmem:[%s1 + $0x3f8] sm:$0xff]
  %v170 = vld [vmem:[%s1 + $0x400] sm:$0xff]
  %v171 = vld [vmem:[%s1 + $0x408] sm:$0xff]
  %v172 = vld [vmem:[%s1 + $0x410] sm:$0xff]
  %v173 = vld [vmem:[%s1 + $0x418] sm:$0xff]
  %v174 = vld [vmem:[%s1 + $0x420] sm:$0xff]
  %v175 = vld [vmem:[%s1 + $0x428] sm:$0xff]
  %v176 = vld [vmem:[%s1 + $0x430] sm:$0xff]
  %v177 = vld [vmem:[%s1 + $0x438] sm:$0xff]
  %v178 = vld [vmem:[%s1 + $0x440] sm:$0xff]
  %v179 = vld [vmem:[%s1 + $0x448] sm:$0xff]
  %v180 = vld [vmem:[%s1 + $0x450] sm:$0xff]
  %v181 = vld [vmem:[%s1 + $0x458] sm:$0xff]
  %v182 = vld [vmem:[%s1 + $0x460] sm:$0xff]
  %v183 = vld [vmem:[%s1 + $0x468] sm:$0xff]
  %v184 = vld [vmem:[%s1 + $0x470] sm:$0xff]
  %v185 = vld [vmem:[%s1 + $0x478] sm:$0xff]
  %v186 = vld [vmem:[%s1 + $0x480] sm:$0xff]
  %v187 = vld [vmem:[%s1 + $0x488] sm:$0xff]
  %v188 = vld [vmem:[%s1 + $0x490] sm:$0xff]
  %v189 = vld [vmem:[%s1 + $0x498] sm:$0xff]
  %v190 = vld [vmem:[%s1 + $0x4a0] sm:$0xff]
  %v191 = vld [vmem:[%s1 + $0x4a8] sm:$0xff]
  %v192 = vld [vmem:[%s1 + $0x4b0] sm:$0xff]
  %v193 = vld [vmem:[%s1 + $0x4b8] sm:$0xff]
  %v194 = vld [vmem:[%s1 + $0x4c0] sm:$0xff]
  %v195 = vld [vmem:[%s1 + $0x4c8] sm:$0xff]
  %v196 = vld [vmem:[%s1 + $0x4d0] sm:$0xff]
  %v197 = vld [vmem:[%s1 + $0x4d8] sm:$0xff]
  %v198 = vld [vmem:[%s1 + $0x4e0] sm:$0xff]
  %v199 = vld [vmem:[%s1 + $0x4e8] sm:$0xff]
  %v200 = vld [vmem:[%s1 + $0x4f0] sm:$0xff]
  %v201 = vld [vmem:[%s1 + $0x4f8] sm:$0xff]
  %v202 = vld [vmem:[%s1 + $0x500] sm:$0xff]
  %v203 = vld [vmem:[%s1 + $0x508] sm:$0xff]
  %v204 = vld [vmem:[%s1 + $0x510] sm:$0xff]
  %v205 = vld [vmem:[%s1 + $0x518] sm:$0xff]
  %v206 = vld [vmem:[%s1 + $0x520] sm:$0xff]
  %v207 = vld [vmem:[%s1 + $0x528] sm:$0xff]
  %v208 = vld [vmem:[%s1 + $0x530] sm:$0xff]
  %v209 = vld [vmem:[%s1 + $0x538] sm:$0xff]
  %v210 = vld [vmem:[%s1 + $0x540] sm:$0xff]
  %v211 = vld [vmem:[%s1 + $0x548] sm:$0xff]
  %v212 = vld [vmem:[%s1 + $0x550] sm:$0xff]
  %v213 = vld [vmem:[%s1 + $0x558] sm:$0xff]
  %v214 = vld [vmem:[%s1 + $0x560] sm:$0xff]
  %v215 = vld [vmem:[%s1 + $0x568] sm:$0xff]
  %v216 = vld [vmem:[%s1 + $0x570] sm:$0xff]
  %v217 = vld [vmem:[%s1 + $0x578] sm:$0xff]
  %v218 = vld [vmem:[%s1 + $0x580] sm:$0xff]
  %v219 = vld [vmem:[%s1 + $0x588] sm:$0xff]
  %v220 = vld [vmem:[%s1 + $0x590] sm:$0xff]
  %v221 = vld [vmem:[%s1 + $0x598] sm:$0xff]
  %v222 = vld [vmem:[%s1 + $0x5a0] sm:$0xff]
  %v223 = vld [vmem:[%s1 + $0x5a8] sm:$0xff]
  %v224 = vld [vmem:[%s1 + $0x5b0] sm:$0xff]
  %v225 = vld [vmem:[%s1 + $0x5b8] sm:$0xff]
  %v226 = vld [vmem:[%s1 + $0x5c0] sm:$0xff]
  %v227 = vld [vmem:[%s1 + $0x5c8] sm:$0xff]
  %v228 = vld [vmem:[%s1 + $0x5d0] sm:$0xff]
  %v229 = vld [vmem:[%s1 + $0x5d8] sm:$0xff]
  %v230 = vld [vmem:[%s1 + $0x5e0] sm:$0xff]
  %v231 = vld [vmem:[%s1 + $0x5e8] sm:$0xff]
  %v232 = vld [vmem:[%s1 + $0x5f0] sm:$0xff]
  %v233 = vld [vmem:[%s1 + $0x5f8] sm:$0xff]
  %v234 = vld [vmem:[%s1 + $0x600] sm:$0xff]
  %v235 = vld [vmem:[%s1 + $0x608] sm:$0xff]
  %v236 = vld [vmem:[%s1 + $0x610] sm:$0xff]
  %v237 = vld [vmem:[%s1 + $0x618] sm:$0xff]
  %v238 = vld [vmem:[%s1 + $0x620] sm:$0xff]
  %v239 = vld [vmem:[%s1 + $0x628] sm:$0xff]
  %v240 = vld [vmem:[%s1 + $0x630] sm:$0xff]
  %v241 = vld [vmem:[%s1 + $0x638] sm:$0xff]
  %v242 = vld [vmem:[%s1 + $0x640] sm:$0xff]
  %v243 = vld [vmem:[%s1 + $0x648] sm:$0xff]
  %v244 = vld [vmem:[%s1 + $0x650] sm:$0xff]
  %v245 = vld [vmem:[%s1 + $0x658] sm:$0xff]
  %v246 = vld [vmem:[%s1 + $0x660] sm:$0xff]
  %v247 = vld [vmem:[%s1 + $0x668] sm:$0xff]
  %v248 = vld [vmem:[%s1 + $0x670] sm:$0xff]
  %v249 = vld [vmem:[%s1 + $0x678] sm:$0xff]
  %250 = vmatprep.subr.mxu0 0.0
  %251 = vmatpush1.msra.mxu0 %v42
  %252 = vmatprep.subr.mxu0 0.0
  %253 = vmatpush1.msra.mxu0 %v43
  %254 = vmatprep.subr.mxu0 0.0
  %255 = vmatpush1.msra.mxu0 %v44
  %256 = vmatprep.subr.mxu0 0.0
  %257 = vmatpush1.msra.mxu0 %v45
  %258 = vmatprep.subr.mxu0 0.0
  %259 = vmatpush1.msra.mxu0 %v46
  %260 = vmatprep.subr.mxu0 0.0
  %261 = vmatpush1.msra.mxu0 %v47
  %262 = vmatprep.subr.mxu0 0.0
  %263 = vmatpush1.msra.mxu0 %v48
  %264 = vmatprep.subr.mxu0 0.0
  %265 = vmatpush1.msra.mxu0 %v49
  %266 = vmatprep.subr.mxu0 0.0
  %267 = vmatpush1.msra.mxu0 %v50
  %268 = vmatprep.subr.mxu0 0.0
  %269 = vmatpush1.msra.mxu0 %v51
  %270 = vmatprep.subr.mxu0 0.0
  %271 = vmatpush1.msra.mxu0 %v52
  %272 = vmatprep.subr.mxu0 0.0
  %273 = vmatpush1.msra.mxu0 %v53
  %274 = vmatprep.subr.mxu0 0.0
  %275 = vmatpush1.msra.mxu0 %v54
  %276 = vmatprep.subr.mxu0 0.0
  %277 = vmatpush1.msra.mxu0 %v55
  %278 = vmatprep.subr.mxu0 0.0
  %279 = vmatpush1.msra.mxu0 %v56
  %280 = vmatprep.subr.mxu0 0.0
  %281 = vmatpush1.msra.mxu0 %v57
  %282 = vmatprep.subr.mxu0 0.0
  %283 = vmatpush1.msra.mxu0 %v58
  %284 = vmatprep.subr.mxu0 0.0
  %285 = vmatpush1.msra.mxu0 %v59
  %286 = vmatprep.subr.mxu0 0.0
  %287 = vmatpush1.msra.mxu0 %v60
  %288 = vmatprep.subr.mxu0 0.0
  %289 = vmatpush1.msra.mxu0 %v61
  %290 = vmatprep.subr.mxu0 0.0
  %291 = vmatpush1.msra.mxu0 %v62
  %292 = vmatprep.subr.mxu0 0.0
  %293 = vmatpush1.msra.mxu0 %v63
  %294 = vmatprep.subr.mxu0 0.0
  %295 = vmatpush1.msra.mxu0 %v64
  %296 = vmatprep.subr.mxu0 0.0
  %297 = vmatpush1.msra.mxu0 %v65
  %298 = vmatprep.subr.mxu0 0.0
  %299 = vmatpush1.msra.mxu0 %v66
  %300 = vmatprep.subr.mxu0 0.0
  %301 = vmatpush1.msra.mxu0 %v67
  %302 = vmatprep.subr.mxu0 0.0
  %303 = vmatpush1.msra.mxu0 %v68
  %304 = vmatprep.subr.mxu0 0.0
  %305 = vmatpush1.msra.mxu0 %v69
  %306 = vmatprep.subr.mxu0 0.0
  %307 = vmatpush1.msra.mxu0 %v70
  %308 = vmatprep.subr.mxu0 0.0
  %309 = vmatpush1.msra.mxu0 %v71
  %310 = vmatprep.subr.mxu0 0.0
  %311 = vmatpush1.msra.mxu0 %v72
  %312 = vmatprep.subr.mxu0 0.0
  %313 = vmatpush1.msra.mxu0 %v73
  %314 = vmatprep.mubr.f32.mxu0 %v17
  %315 = vmatmul.mubr.f32.gmra.mrb[0].mxu0 %v16
  %v316 = vpop.f32.mrb[0].mxu0
  %v317 = vadd.f32 0.0, %v316
  %v318 = vpop.f32.mrb[0].mxu0
  %319 = vmatprep.mubr.f32.mxu0 %v30
  %320 = vmatmul.mubr.f32.gmra.mrb[0].mxu0 %v29
  %v321 = vpop.f32.mrb[0].mxu0
  %v322 = vadd.f32 0.0, %v321
  %v323 = vpop.f32.mrb[0].mxu0
  %324 = vdwg.mxu0
  %325 = vmatprep.subr.mxu0 0.0
  %326 = vmatpush1.msra.mxu0 %v74
  %327 = vmatprep.subr.mxu0 0.0
  %328 = vmatpush1.msra.mxu0 %v75
  %329 = vmatprep.subr.mxu0 0.0
  %330 = vmatpush1.msra.mxu0 %v76
  %331 = vmatprep.subr.mxu0 0.0
  %332 = vmatpush1.msra.mxu0 %v77
  %333 = vmatprep.subr.mxu0 0.0
  %334 = vmatpush1.msra.mxu0 %v78
  %335 = vmatprep.subr.mxu0 0.0
  %336 = vmatpush1.msra.mxu0 %v79
  %337 = vmatprep.subr.mxu0 0.0
  %338 = vmatpush1.msra.mxu0 %v80
  %339 = vmatprep.subr.mxu0 0.0
  %340 = vmatpush1.msra.mxu0 %v81
  %341 = vmatprep.subr.mxu0 0.0
  %342 = vmatpush1.msra.mxu0 %v82
  %343 = vmatprep.subr.mxu0 0.0
  %344 = vmatpush1.msra.mxu0 %v83
  %345 = vmatprep.subr.mxu0 0.0
  %346 = vmatpush1.msra.mxu0 %v84
  %347 = vmatprep.subr.mxu0 0.0
  %348 = vmatpush1.msra.mxu0 %v85
  %349 = vmatprep.subr.mxu0 0.0
  %350 = vmatpush1.msra.mxu0 %v86
  %351 = vmatprep.subr.mxu0 0.0
  %352 = vmatpush1.msra.mxu0 %v87
  %353 = vmatprep.subr.mxu0 0.0
  %354 = vmatpush1.msra.mxu0 %v88
  %355 = vmatprep.subr.mxu0 0.0
  %356 = vmatpush1.msra.mxu0 %v89
  %357 = vmatprep.subr.mxu0 0.0
  %358 = vmatpush1.msra.mxu0 %v90
  %359 = vmatprep.subr.mxu0 0.0
  %360 = vmatpush1.msra.mxu0 %v91
  %361 = vmatprep.subr.mxu0 0.0
  %362 = vmatpush1.msra.mxu0 %v92
  %363 = vmatprep.subr.mxu0 0.0
  %364 = vmatpush1.msra.mxu0 %v93
  %365 = vmatprep.subr.mxu0 0.0
  %366 = vmatpush1.msra.mxu0 %v94
  %367 = vmatprep.subr.mxu0 0.0
  %368 = vmatpush1.msra.mxu0 %v95
  %369 = vmatprep.subr.mxu0 0.0
  %370 = vmatpush1.msra.mxu0 %v96
  %371 = vmatprep.subr.mxu0 0.0
  %372 = vmatpush1.msra.mxu0 %v97
  %373 = vmatprep.subr.mxu0 0.0
  %374 = vmatpush1.msra.mxu0 %v98
  %375 = vmatprep.subr.mxu0 0.0
  %376 = vmatpush1.msra.mxu0 %v99
  %377 = vmatprep.subr.mxu0 0.0
  %378 = vmatpush1.msra.mxu0 %v100
  %379 = vmatprep.subr.mxu0 0.0
  %380 = vmatpush1.msra.mxu0 %v101
  %381 = vmatprep.subr.mxu0 0.0
  %382 = vmatpush1.msra.mxu0 %v102
  %383 = vmatprep.subr.mxu0 0.0
  %384 = vmatpush1.msra.mxu0 %v103
  %385 = vmatprep.subr.mxu0 0.0
  %386 = vmatpush1.msra.mxu0 %v104
  %387 = vmatprep.subr.mxu0 0.0
  %388 = vmatpush1.msra.mxu0 %v105
  %389 = vmatprep.mubr.f32.mxu0 %v19
  %390 = vmatmul.mubr.f32.gmra.mrb[0].mxu0 %v18
  %v391 = vpop.f32.mrb[0].mxu0
  %v392 = vadd.f32 %v317, %v391
  %v393 = vpop.f32.mrb[0].mxu0
  %394 = vmatprep.mubr.f32.mxu0 %v32
  %395 = vmatmul.mubr.f32.gmra.mrb[0].mxu0 %v31
  %v396 = vpop.f32.mrb[0].mxu0
  %v397 = vadd.f32 %v322, %v396
  %v398 = vpop.f32.mrb[0].mxu0
  %399 = vdwg.mxu0
  %400 = vmatprep.subr.mxu0 0.0
  %401 = vmatpush1.msra.mxu0 %v106
  %402 = vmatprep.subr.mxu0 0.0
  %403 = vmatpush1.msra.mxu0 %v107
  %404 = vmatprep.subr.mxu0 0.0
  %405 = vmatpush1.msra.mxu0 %v108
  %406 = vmatprep.subr.mxu0 0.0
  %407 = vmatpush1.msra.mxu0 %v109
  %408 = vmatprep.subr.mxu0 0.0
  %409 = vmatpush1.msra.mxu0 %v110
  %410 = vmatprep.subr.mxu0 0.0
  %411 = vmatpush1.msra.mxu0 %v111
  %412 = vmatprep.subr.mxu0 0.0
  %413 = vmatpush1.msra.mxu0 %v112
  %414 = vmatprep.subr.mxu0 0.0
  %415 = vmatpush1.msra.mxu0 %v113
  %416 = vmatprep.subr.mxu0 0.0
  %417 = vmatpush1.msra.mxu0 %v114
  %418 = vmatprep.subr.mxu0 0.0
  %419 = vmatpush1.msra.mxu0 %v115
  %420 = vmatprep.subr.mxu0 0.0
  %421 = vmatpush1.msra.mxu0 %v116
  %422 = vmatprep.subr.mxu0 0.0
  %423 = vmatpush1.msra.mxu0 %v117
  %424 = vmatprep.subr.mxu0 0.0
  %425 = vmatpush1.msra.mxu0 %v118
  %426 = vmatprep.subr.mxu0 0.0
  %427 = vmatpush1.msra.mxu0 %v119
  %428 = vmatprep.subr.mxu0 0.0
  %429 = vmatpush1.msra.mxu0 %v120
  %430 = vmatprep.subr.mxu0 0.0
  %431 = vmatpush1.msra.mxu0 %v121
  %432 = vmatprep.subr.mxu0 0.0
  %433 = vmatpush1.msra.mxu0 %v122
  %434 = vmatprep.subr.mxu0 0.0
  %435 = vmatpush1.msra.mxu0 %v123
  %436 = vmatprep.subr.mxu0 0.0
  %437 = vmatpush1.msra.mxu0 %v124
  %438 = vmatprep.subr.mxu0 0.0
  %439 = vmatpush1.msra.mxu0 %v125
  %440 = vmatprep.subr.mxu0 0.0
  %441 = vmatpush1.msra.mxu0 %v126
  %442 = vmatprep.subr.mxu0 0.0
  %443 = vmatpush1.msra.mxu0 %v127
  %444 = vmatprep.subr.mxu0 0.0
  %445 = vmatpush1.msra.mxu0 %v128
  %446 = vmatprep.subr.mxu0 0.0
  %447 = vmatpush1.msra.mxu0 %v129
  %448 = vmatprep.subr.mxu0 0.0
  %449 = vmatpush1.msra.mxu0 %v130
  %450 = vmatprep.subr.mxu0 0.0
  %451 = vmatpush1.msra.mxu0 %v131
  %452 = vmatprep.subr.mxu0 0.0
  %453 = vmatpush1.msra.mxu0 %v132
  %454 = vmatprep.subr.mxu0 0.0
  %455 = vmatpush1.msra.mxu0 %v133
  %456 = vmatprep.subr.mxu0 0.0
  %457 = vmatpush1.msra.mxu0 %v134
  %458 = vmatprep.subr.mxu0 0.0
  %459 = vmatpush1.msra.mxu0 %v135
  %460 = vmatprep.subr.mxu0 0.0
  %461 = vmatpush1.msra.mxu0 %v136
  %462 = vmatprep.subr.mxu0 0.0
  %463 = vmatpush1.msra.mxu0 %v137
  %464 = vmatprep.mubr.f32.mxu0 %v21
  %465 = vmatmul.mubr.f32.gmra.mrb[0].mxu0 %v20
  %v466 = vpop.f32.mrb[0].mxu0
  %v467 = vadd.f32 %v392, %v466
  %v468 = vpop.f32.mrb[0].mxu0
  %469 = vmatprep.mubr.f32.mxu0 %v34
  %470 = vmatmul.mubr.f32.gmra.mrb[0].mxu0 %v33
  %v471 = vpop.f32.mrb[0].mxu0
  %v472 = vadd.f32 %v397, %v471
  %v473 = vpop.f32.mrb[0].mxu0
  %474 = vdwg.mxu0
  %475 = vmatprep.subr.mxu0 0.0
  %476 = vmatpush1.msra.mxu0 %v138
  %477 = vmatprep.subr.mxu0 0.0
  %478 = vmatpush1.msra.mxu0 %v139
  %479 = vmatprep.subr.mxu0 0.0
  %480 = vmatpush1.msra.mxu0 %v140
  %481 = vmatprep.subr.mxu0 0.0
  %482 = vmatpush1.msra.mxu0 %v141
  %483 = vmatprep.subr.mxu0 0.0
  %484 = vmatpush1.msra.mxu0 %v142
  %485 = vmatprep.subr.mxu0 0.0
  %486 = vmatpush1.msra.mxu0 %v143
  %487 = vmatprep.subr.mxu0 0.0
  %488 = vmatpush1.msra.mxu0 %v144
  %489 = vmatprep.subr.mxu0 0.0
  %490 = vmatpush1.msra.mxu0 %v145
  %491 = vmatprep.subr.mxu0 0.0
  %492 = vmatpush1.msra.mxu0 %v146
  %493 = vmatprep.subr.mxu0 0.0
  %494 = vmatpush1.msra.mxu0 %v147
  %495 = vmatprep.subr.mxu0 0.0
  %496 = vmatpush1.msra.mxu0 %v148
  %497 = vmatprep.subr.mxu0 0.0
  %498 = vmatpush1.msra.mxu0 %v149
  %499 = vmatprep.subr.mxu0 0.0
  %500 = vmatpush1.msra.mxu0 %v150
  %501 = vmatprep.subr.mxu0 0.0
  %502 = vmatpush1.msra.mxu0 %v151
  %503 = vmatprep.subr.mxu0 0.0
  %504 = vmatpush1.msra.mxu0 %v152
  %505 = vmatprep.subr.mxu0 0.0
  %506 = vmatpush1.msra.mxu0 %v153
  %507 = vmatprep.subr.mxu0 0.0
  %508 = vmatpush1.msra.mxu0 %v154
  %509 = vmatprep.subr.mxu0 0.0
  %510 = vmatpush1.msra.mxu0 %v155
  %511 = vmatprep.subr.mxu0 0.0
  %512 = vmatpush1.msra.mxu0 %v156
  %513 = vmatprep.subr.mxu0 0.0
  %514 = vmatpush1.msra.mxu0 %v157
  %515 = vmatprep.subr.mxu0 0.0
  %516 = vmatpush1.msra.mxu0 %v158
  %517 = vmatprep.subr.mxu0 0.0
  %518 = vmatpush1.msra.mxu0 %v159
  %519 = vmatprep.subr.mxu0 0.0
  %520 = vmatpush1.msra.mxu0 %v160
  %521 = vmatprep.subr.mxu0 0.0
  %522 = vmatpush1.msra.mxu0 %v161
  %523 = vmatprep.subr.mxu0 0.0
  %524 = vmatpush1.msra.mxu0 %v162
  %525 = vmatprep.subr.mxu0 0.0
  %526 = vmatpush1.msra.mxu0 %v163
  %527 = vmatprep.subr.mxu0 0.0
  %528 = vmatpush1.msra.mxu0 %v164
  %529 = vmatprep.subr.mxu0 0.0
  %530 = vmatpush1.msra.mxu0 %v165
  %531 = vmatprep.subr.mxu0 0.0
  %532 = vmatpush1.msra.mxu0 %v166
  %533 = vmatprep.subr.mxu0 0.0
  %534 = vmatpush1.msra.mxu0 %v167
  %535 = vmatprep.subr.mxu0 0.0
  %536 = vmatpush1.msra.mxu0 %v168
  %537 = vmatprep.subr.mxu0 0.0
  %538 = vmatpush1.msra.mxu0 %v169
  %539 = vmatprep.mubr.f32.mxu0 %v23
  %540 = vmatmul.mubr.f32.gmra.mrb[0].mxu0 %v22
  %v541 = vpop.f32.mrb[0].mxu0
  %v542 = vadd.f32 %v467, %v541
  %v543 = vpop.f32.mrb[0].mxu0
  %544 = vmatprep.mubr.f32.mxu0 %v36
  %545 = vmatmul.mubr.f32.gmra.mrb[0].mxu0 %v35
  %v546 = vpop.f32.mrb[0].mxu0
  %v547 = vadd.f32 %v472, %v546
  %v548 = vpop.f32.mrb[0].mxu0
  %549 = vdwg.mxu0
  %550 = vmatprep.subr.mxu0 0.0
  %551 = vmatpush1.msra.mxu0 %v170
  %552 = vmatprep.subr.mxu0 0.0
  %553 = vmatpush1.msra.mxu0 %v171
  %554 = vmatprep.subr.mxu0 0.0
  %555 = vmatpush1.msra.mxu0 %v172
  %556 = vmatprep.subr.mxu0 0.0
  %557 = vmatpush1.msra.mxu0 %v173
  %558 = vmatprep.subr.mxu0 0.0
  %559 = vmatpush1.msra.mxu0 %v174
  %560 = vmatprep.subr.mxu0 0.0
  %561 = vmatpush1.msra.mxu0 %v175
  %562 = vmatprep.subr.mxu0 0.0
  %563 = vmatpush1.msra.mxu0 %v176
  %564 = vmatprep.subr.mxu0 0.0
  %565 = vmatpush1.msra.mxu0 %v177
  %566 = vmatprep.subr.mxu0 0.0
  %567 = vmatpush1.msra.mxu0 %v178
  %568 = vmatprep.subr.mxu0 0.0
  %569 = vmatpush1.msra.mxu0 %v179
  %570 = vmatprep.subr.mxu0 0.0
  %571 = vmatpush1.msra.mxu0 %v180
  %572 = vmatprep.subr.mxu0 0.0
  %573 = vmatpush1.msra.mxu0 %v181
  %574 = vmatprep.subr.mxu0 0.0
  %575 = vmatpush1.msra.mxu0 %v182
  %576 = vmatprep.subr.mxu0 0.0
  %577 = vmatpush1.msra.mxu0 %v183
  %578 = vmatprep.subr.mxu0 0.0
  %579 = vmatpush1.msra.mxu0 %v184
  %580 = vmatprep.subr.mxu0 0.0
  %581 = vmatpush1.msra.mxu0 %v185
  %582 = vmatprep.subr.mxu0 0.0
  %583 = vmatpush1.msra.mxu0 %v186
  %584 = vmatprep.subr.mxu0 0.0
  %585 = vmatpush1.msra.mxu0 %v187
  %586 = vmatprep.subr.mxu0 0.0
  %587 = vmatpush1.msra.mxu0 %v188
  %588 = vmatprep.subr.mxu0 0.0
  %589 = vmatpush1.msra.mxu0 %v189
  %590 = vmatprep.subr.mxu0 0.0
  %591 = vmatpush1.msra.mxu0 %v190
  %592 = vmatprep.subr.mxu0 0.0
  %593 = vmatpush1.msra.mxu0 %v191
  %594 = vmatprep.subr.mxu0 0.0
  %595 = vmatpush1.msra.mxu0 %v192
  %596 = vmatprep.subr.mxu0 0.0
  %597 = vmatpush1.msra.mxu0 %v193
  %598 = vmatprep.subr.mxu0 0.0
  %599 = vmatpush1.msra.mxu0 %v194
  %600 = vmatprep.subr.mxu0 0.0
  %601 = vmatpush1.msra.mxu0 %v195
  %602 = vmatprep.subr.mxu0 0.0
  %603 = vmatpush1.msra.mxu0 %v196
  %604 = vmatprep.subr.mxu0 0.0
  %605 = vmatpush1.msra.mxu0 %v197
  %606 = vmatprep.subr.mxu0 0.0
  %607 = vmatpush1.msra.mxu0 %v198
  %608 = vmatprep.subr.mxu0 0.0
  %609 = vmatpush1.msra.mxu0 %v199
  %610 = vmatprep.subr.mxu0 0.0
  %611 = vmatpush1.msra.mxu0 %v200
  %612 = vmatprep.subr.mxu0 0.0
  %613 = vmatpush1.msra.mxu0 %v201
  %614 = vmatprep.mubr.f32.mxu0 %v25
  %615 = vmatmul.mubr.f32.gmra.mrb[0].mxu0 %v24
  %v616 = vpop.f32.mrb[0].mxu0
  %v617 = vadd.f32 %v542, %v616
  %v618 = vpop.f32.mrb[0].mxu0
  %619 = vmatprep.mubr.f32.mxu0 %v38
  %620 = vmatmul.mubr.f32.gmra.mrb[0].mxu0 %v37
  %v621 = vpop.f32.mrb[0].mxu0
  %v622 = vadd.f32 %v547, %v621
  %v623 = vpop.f32.mrb[0].mxu0
  %624 = vdwg.mxu0
  %625 = vmatprep.subr.mxu0 0.0
  %626 = vmatpush1.msra.mxu0 %v202
  %627 = vmatprep.subr.mxu0 0.0
  %628 = vmatpush1.msra.mxu0 %v203
  %629 = vmatprep.subr.mxu0 0.0
  %630 = vmatpush1.msra.mxu0 %v204
  %631 = vmatprep.subr.mxu0 0.0
  %632 = vmatpush1.msra.mxu0 %v205
  %633 = vmatprep.subr.mxu0 0.0
  %634 = vmatpush1.msra.mxu0 %v206
  %635 = vmatprep.subr.mxu0 0.0
  %636 = vmatpush1.msra.mxu0 %v207
  %637 = vmatprep.subr.mxu0 0.0
  %638 = vmatpush1.msra.mxu0 %v208
  %639 = vmatprep.subr.mxu0 0.0
  %640 = vmatpush1.msra.mxu0 %v209
  %641 = vmatprep.subr.mxu0 0.0
  %642 = vmatpush1.msra.mxu0 %v210
  %643 = vmatprep.subr.mxu0 0.0
  %644 = vmatpush1.msra.mxu0 %v211
  %645 = vmatprep.subr.mxu0 0.0
  %646 = vmatpush1.msra.mxu0 %v212
  %647 = vmatprep.subr.mxu0 0.0
  %648 = vmatpush1.msra.mxu0 %v213
  %649 = vmatprep.subr.mxu0 0.0
  %650 = vmatpush1.msra.mxu0 %v214
  %651 = vmatprep.subr.mxu0 0.0
  %652 = vmatpush1.msra.mxu0 %v215
  %653 = vmatprep.subr.mxu0 0.0
  %654 = vmatpush1.msra.mxu0 %v216
  %655 = vmatprep.subr.mxu0 0.0
  %656 = vmatpush1.msra.mxu0 %v217
  %657 = vmatprep.subr.mxu0 0.0
  %658 = vmatpush1.msra.mxu0 %v218
  %659 = vmatprep.subr.mxu0 0.0
  %660 = vmatpush1.msra.mxu0 %v219
  %661 = vmatprep.subr.mxu0 0.0
  %662 = vmatpush1.msra.mxu0 %v220
  %663 = vmatprep.subr.mxu0 0.0
  %664 = vmatpush1.msra.mxu0 %v221
  %665 = vmatprep.subr.mxu0 0.0
  %666 = vmatpush1.msra.mxu0 %v222
  %667 = vmatprep.subr.mxu0 0.0
  %668 = vmatpush1.msra.mxu0 %v223
  %669 = vmatprep.subr.mxu0 0.0
  %670 = vmatpush1.msra.mxu0 %v224
  %671 = vmatprep.subr.mxu0 0.0
  %672 = vmatpush1.msra.mxu0 %v225
  %673 = vmatprep.subr.mxu0 0.0
  %674 = vmatpush1.msra.mxu0 %v226
  %675 = vmatprep.subr.mxu0 0.0
  %676 = vmatpush1.msra.mxu0 %v227
  %677 = vmatprep.subr.mxu0 0.0
  %678 = vmatpush1.msra.mxu0 %v228
  %679 = vmatprep.subr.mxu0 0.0
  %680 = vmatpush1.msra.mxu0 %v229
  %681 = vmatprep.subr.mxu0 0.0
  %682 = vmatpush1.msra.mxu0 %v230
  %683 = vmatprep.subr.mxu0 0.0
  %684 = vmatpush1.msra.mxu0 %v231
  %685 = vmatprep.subr.mxu0 0.0
  %686 = vmatpush1.msra.mxu0 %v232
  %687 = vmatprep.subr.mxu0 0.0
  %688 = vmatpush1.msra.mxu0 %v233
  %689 = vmatprep.mubr.f32.mxu0 %v27
  %690 = vmatmul.mubr.f32.gmra.mrb[0].mxu0 %v26
  %v691 = vpop.f32.mrb[0].mxu0
  %v692 = vadd.f32 %v617, %v691
  %v693 = vpop.f32.mrb[0].mxu0
  %694 = vmatprep.mubr.f32.mxu0 %v40
  %695 = vmatmul.mubr.f32.gmra.mrb[0].mxu0 %v39
  %v696 = vpop.f32.mrb[0].mxu0
  %v697 = vadd.f32 %v622, %v696
  %v698 = vpop.f32.mrb[0].mxu0
  %699 = vdwg.mxu0
  %700 = vmatprep.subr.mxu0 0.0
  %701 = vmatpush1.msra.mxu0 %v234
  %702 = vmatprep.subr.mxu0 0.0
  %703 = vmatpush1.msra.mxu0 %v235
  %704 = vmatprep.subr.mxu0 0.0
  %705 = vmatpush1.msra.mxu0 %v236
  %706 = vmatprep.subr.mxu0 0.0
  %707 = vmatpush1.msra.mxu0 %v237
  %708 = vmatprep.subr.mxu0 0.0
  %709 = vmatpush1.msra.mxu0 %v238
  %710 = vmatprep.subr.mxu0 0.0
  %711 = vmatpush1.msra.mxu0 %v239
  %712 = vmatprep.subr.mxu0 0.0
  %713 = vmatpush1.msra.mxu0 %v240
  %714 = vmatprep.subr.mxu0 0.0
  %715 = vmatpush1.msra.mxu0 %v241
  %716 = vmatprep.subr.mxu0 0.0
  %717 = vmatpush1.msra.mxu0 %v242
  %718 = vmatprep.subr.mxu0 0.0
  %719 = vmatpush1.msra.mxu0 %v243
  %720 = vmatprep.subr.mxu0 0.0
  %721 = vmatpush1.msra.mxu0 %v244
  %722 = vmatprep.subr.mxu0 0.0
  %723 = vmatpush1.msra.mxu0 %v245
  %724 = vmatprep.subr.mxu0 0.0
  %725 = vmatpush1.msra.mxu0 %v246
  %726 = vmatprep.subr.mxu0 0.0
  %727 = vmatpush1.msra.mxu0 %v247
  %728 = vmatprep.subr.mxu0 0.0
  %729 = vmatpush1.msra.mxu0 %v248
  %730 = vmatprep.subr.mxu0 0.0
  %731 = vmatpush1.msra.mxu0 %v249
  %732 = vmatprep.subr.mxu0 0.0
  %733 = vmatpush1.msra.mxu0 0.0
  %734 = vmatprep.subr.mxu0 0.0
  %735 = vmatpush1.msra.mxu0 0.0
  %736 = vmatprep.subr.mxu0 0.0
  %737 = vmatpush1.msra.mxu0 0.0
  %738 = vmatprep.subr.mxu0 0.0
  %739 = vmatpush1.msra.mxu0 0.0
  %740 = vmatprep.subr.mxu0 0.0
  %741 = vmatpush1.msra.mxu0 0.0
  %742 = vmatprep.subr.mxu0 0.0
  %743 = vmatpush1.msra.mxu0 0.0
  %744 = vmatprep.subr.mxu0 0.0
  %745 = vmatpush1.msra.mxu0 0.0
  %746 = vmatprep.subr.mxu0 0.0
  %747 = vmatpush1.msra.mxu0 0.0
  %748 = vmatprep.subr.mxu0 0.0
  %749 = vmatpush1.msra.mxu0 0.0
  %750 = vmatprep.subr.mxu0 0.0
  %751 = vmatpush1.msra.mxu0 0.0
  %752 = vmatprep.subr.mxu0 0.0
  %753 = vmatpush1.msra.mxu0 0.0
  %754 = vmatprep.subr.mxu0 0.0
  %755 = vmatpush1.msra.mxu0 0.0
  %756 = vmatprep.subr.mxu0 0.0
  %757 = vmatpush1.msra.mxu0 0.0
  %758 = vmatprep.subr.mxu0 0.0
  %759 = vmatpush1.msra.mxu0 0.0
  %760 = vmatprep.subr.mxu0 0.0
  %761 = vmatpush1.msra.mxu0 0.0
  %762 = vmatprep.subr.mxu0 0.0
  %763 = vmatpush1.msra.mxu0 0.0
  %764 = vmatprep.mubr.f32.mxu0 0.0
  %765 = vmatmul.mubr.f32.gmra.mrb[0].mxu0 %v28
  %v766 = vpop.f32.mrb[0].mxu0
  %v767 = vadd.f32 %v692, %v766
  %v768 = vpop.f32.mrb[0].mxu0
  %769 = vmatprep.mubr.f32.mxu0 0.0
  %770 = vmatmul.mubr.f32.gmra.mrb[0].mxu0 %v41
  %v771 = vpop.f32.mrb[0].mxu0
  %v772 = vadd.f32 %v697, %v771
  %v773 = vpop.f32.mrb[0].mxu0
  %774 = vdwg.mxu0
  %v775 = vadd.f32 %v14, %v767
  %v776 = vadd.f32 %v15, %v772
  %vm777 = vcmask 261120
  %778 = vst.msk [vmem:[%s3] sm:$0xff] %vm777, %v775
  %779 = vst.msk [vmem:[%s3 + $0x8] sm:$0xff] %vm777, %v776
  // Predicated region
  $region14: #{model_forward.1} parent=0 // pred_check
    _
  $region15: #{model_forward.1} parent=0 // pred_check_branch
    %781 = sbr.rel (0) target = $region17
  $region16: #{model_forward.1} parent=0 // pred_region
    _
  $region17: #{model_forward.1} parent=0 // pred_fallthru
    _
  // Predicated region
  $region18: #{model_forward.1} parent=0 // pred_check
    _
  $region19: #{model_forward.1} parent=0 // pred_check_branch
    %783 = sbr.rel (0) target = $region21
  $region20: #{model_forward.1} parent=0 // pred_region
    _
  $region21: #{model_forward.1} parent=0 // pred_fallthru
    _

</llo_original>
